<compile_context>
chip_gen: v7x
topology: tpu7x:2x2x1
jax: 0.10.0
libtpu: 0.0.40
codegen_flags: <defaults>
</compile_context>

<pallas_src>
import jax
import jax.numpy as jnp
from jax.experimental import pallas as pl
from jax.experimental.pallas import tpu as pltpu

_LANES = 128          # lane width: batch rows mapped onto lanes in the output
_SUB = 8              # sublane granularity for the (8, 128) block constraint
_ROW_BLK = _SUB * _LANES   # 1024 rows: padding granularity for the batch dim


def _freq_filter_kernel(x_ref, w_ref, b_ref, o_ref):
    # x_ref: (k, 128, D) VMEM    w_ref: (1, 1, D) VMEM (resident across steps)
    # b_ref: (1, 1) SMEM         o_ref: (k, 128) VMEM (lane-dense)
    prod = x_ref[...] * w_ref[...]            # VPU elementwise, broadcast over rows
    y = jnp.sum(prod, axis=-1)                # lane reduce -> (k, 128)
    y = y + b_ref[0, 0]
    o_ref[...] = jnp.maximum(y, 0.0).astype(o_ref.dtype)


def _choose_k(r, feat, itemsize, target_bytes=4 << 20):
    """Row-groups (of 128 rows) per grid step.

    Returns k such that k divides r, k is a multiple of 8 (or k == r), and the
    x block (k * 128 * feat * itemsize bytes) stays near `target_bytes`.
    Exact division means every grid block is full — no partial-block semantics.
    """
    per_group = _LANES * feat * itemsize
    k_cap = max(_SUB, (target_bytes // max(1, per_group)) // _SUB * _SUB)
    if r <= k_cap:
        return r                               # single full-extent block
    m = r // _SUB                              # r is a multiple of 8 by construction
    best = 1
    d = 1
    while d * d <= m:
        if m % d == 0:
            for cand in (d, m // d):
                if _SUB * cand <= k_cap and cand > best:
                    best = cand
        d += 1
    return _SUB * best


@jax.jit
def frequency_filter(x, weight, bias):
    """x: (B, D) f32; weight: (1, D) f32 (PyTorch nn.Linear layout); bias: (1,) f32."""
    batch, feat = x.shape

    # Pad batch only up to a multiple of 1024 rows (not a multiple of the tile).
    batch_pad = pl.cdiv(batch, _ROW_BLK) * _ROW_BLK
    if batch_pad != batch:
        x = jnp.pad(x, ((0, batch_pad - batch), (0, 0)))

    r = batch_pad // _LANES                    # number of 128-row groups (multiple of 8)
    x3 = x.reshape(r, _LANES, feat)            # free row-major reshape
    w3 = weight.reshape(1, 1, feat)
    b2 = bias.reshape(1, 1)

    k = _choose_k(r, feat, jnp.dtype(x.dtype).itemsize)
    grid = (r // k,)

    out = pl.pallas_call(
        _freq_filter_kernel,
        out_shape=jax.ShapeDtypeStruct((r, _LANES), x.dtype),
        grid=grid,
        in_specs=[
            pl.BlockSpec((k, _LANES, feat), lambda i: (i, 0, 0)),   # batch-tiled x
            pl.BlockSpec((1, 1, feat), lambda i: (0, 0, 0)),        # weight, VMEM-resident
            pl.BlockSpec(memory_space=pltpu.SMEM),                  # bias scalar
        ],
        out_specs=pl.BlockSpec((k, _LANES), lambda i: (i, 0)),      # lane-dense output
        compiler_params=pltpu.CompilerParams(
            dimension_semantics=("parallel",),
            vmem_limit_bytes=32 * 1024 * 1024,
        ),
    )(x3, w3, b2)

    return out.reshape(batch_pad, 1)[:batch]


if __name__ == "__main__":
    def ref_fn(x, w, b):
        return jnp.maximum(x @ w.T + b, 0.0)

    def make_case(key, batch, input_size):
        k1, k2, k3 = jax.random.split(key, 3)
        bound = 1.0 / (input_size ** 0.5)
        x = jax.random.normal(k1, (batch, input_size), dtype=jnp.float32)
        w = jax.random.uniform(k2, (1, input_size), minval=-bound, maxval=bound,
                               dtype=jnp.float32)
        b = jax.random.uniform(k3, (1,), minval=-bound, maxval=bound,
                               dtype=jnp.float32)
        return x, w, b

    key = jax.random.PRNGKey(0)
    k_small, k_pad, k_big = jax.random.split(key, 3)

    # Case 1: small shape matching the module spec (batch=8, input_size=32).
    x, w, b = make_case(k_small, batch=8, input_size=32)
    out = frequency_filter(x, w, b)
    jax.block_until_ready(out)
    assert out.shape == (8, 1)
    assert jnp.allclose(out, ref_fn(x, w, b), atol=1e-4), "mismatch (small)"

    # Case 2: non-multiple batch -> exercises padding + multi-step grid.
    x, w, b = make_case(k_pad, batch=4100, input_size=256)
    out = frequency_filter(x, w, b)
    jax.block_until_ready(out)
    assert out.shape == (4100, 1)
    assert jnp.allclose(out, ref_fn(x, w, b), atol=1e-4), "mismatch (padded)"

    # Case 3: aligned batch -> no padding, larger blocks, multi-step grid.
    x, w, b = make_case(k_big, batch=8192, input_size=256)
    out = frequency_filter(x, w, b)
    jax.block_until_ready(out)
    assert out.shape == (8192, 1)
    assert jnp.allclose(out, ref_fn(x, w, b), atol=1e-4), "mismatch (aligned)"

    print("KERNEL_OK")
</pallas_src>

<mosaic_0001>
module attributes {stable_mosaic.version = 11 : i64} {
  func.func @_freq_filter_kernel(%arg0: i32, %arg1: memref<8x128x32xf32, #tpu.memory_space<vmem>>, %arg2: memref<1x1x32xf32, #tpu.memory_space<vmem>>, %arg3: memref<1x1xf32, #tpu.memory_space<smem>>, %arg4: memref<8x128xf32, #tpu.memory_space<vmem>>) attributes {dimension_semantics = [#tpu.dimension_semantics<parallel>], iteration_bounds = array<i64: 1>, scalar_prefetch = 0 : i64, scratch_operands = 0 : i64, tpu.core_type = #tpu.core_type<tc>, window_params = [{transform_indices = @transform_0, window_bounds = array<i64: 8, 128, 32>}, {pipeline_mode = #tpu.pipeline_mode<synchronous>, transform_indices = @transform_1, window_bounds = array<i64: 1, 1, 32>}, {transform_indices = @transform_2, window_bounds = array<i64: 1, 1>}, {transform_indices = @transform_3, window_bounds = array<i64: 8, 128>}]} {
    %c0 = arith.constant 0 : index
    %c0_0 = arith.constant 0 : index
    %c0_1 = arith.constant 0 : index
    %0 = vector.load %arg1[%c0, %c0_0, %c0_1] : memref<8x128x32xf32, #tpu.memory_space<vmem>>, vector<8x128x32xf32>
    %c0_2 = arith.constant 0 : index
    %c0_3 = arith.constant 0 : index
    %c0_4 = arith.constant 0 : index
    %1 = vector.load %arg2[%c0_2, %c0_3, %c0_4] : memref<1x1x32xf32, #tpu.memory_space<vmem>>, vector<1x1x32xf32>
    %2 = vector.broadcast %1 : vector<1x1x32xf32> to vector<8x128x32xf32>
    %3 = arith.mulf %0, %2 : vector<8x128x32xf32>
    %cst = arith.constant dense<0.000000e+00> : vector<8x128xf32>
    %4 = vector.multi_reduction <add>, %3, %cst [2] : vector<8x128x32xf32> to vector<8x128xf32>
    %c0_5 = arith.constant 0 : index
    %c0_6 = arith.constant 0 : index
    %5 = memref.load %arg3[%c0_5, %c0_6] : memref<1x1xf32, #tpu.memory_space<smem>>
    %6 = vector.broadcast %5 : f32 to vector<8x128xf32>
    %7 = arith.addf %4, %6 : vector<8x128xf32>
    %cst_7 = arith.constant 0.000000e+00 : f32
    %8 = vector.broadcast %cst_7 : f32 to vector<8x128xf32>
    %9 = arith.maximumf %7, %8 : vector<8x128xf32>
    %c0_8 = arith.constant 0 : index
    %c0_9 = arith.constant 0 : index
    %10 = vector.load %arg4[%c0_8, %c0_9] : memref<8x128xf32, #tpu.memory_space<vmem>>, vector<8x128xf32>
    tpu.vector_store %arg4[%c0_8, %c0_9], %9 {strides = array<i32>} : memref<8x128xf32, #tpu.memory_space<vmem>>, vector<8x128xf32>,
    return
  }
  func.func @transform_0(%arg0: i32) -> (i32, i32, i32) {
    %c0_i32 = arith.constant 0 : i32
    %c0_i32_0 = arith.constant 0 : i32
    %c0_i32_1 = arith.constant 0 : i32
    return %arg0, %c0_i32, %c0_i32_0 : i32, i32, i32
  }
  func.func @transform_1(%arg0: i32) -> (i32, i32, i32) {
    %c0_i32 = arith.constant 0 : i32
    %c0_i32_0 = arith.constant 0 : i32
    %c0_i32_1 = arith.constant 0 : i32
    %c0_i32_2 = arith.constant 0 : i32
    return %c0_i32, %c0_i32_0, %c0_i32_1 : i32, i32, i32
  }
  func.func @transform_2(%arg0: i32) -> (i32, i32) {
    %c0_i32 = arith.constant 0 : i32
    %c0_i32_0 = arith.constant 0 : i32
    %c0_i32_1 = arith.constant 0 : i32
    return %c0_i32, %c0_i32_0 : i32, i32
  }
  func.func @transform_3(%arg0: i32) -> (i32, i32) {
    %c0_i32 = arith.constant 0 : i32
    %c0_i32_0 = arith.constant 0 : i32
    return %arg0, %c0_i32 : i32, i32
  }
}

</mosaic_0001>

<llo_original>
// kernel: frequency_filter.1
$region0: #{frequency_filter.1}
  #allocation0 [shape = 'u32[]', space=smem, size = 0x4, offset = 0x4, fixed_abs, tag = 'smem constant byte address 0x4 - core index']
  #allocation1 [shape = 'u32[144,128]{1,0:T(1,128)}', space=vmem, size = 0x12000, scoped, tag = 'internal scratch']
  #allocation2 [shape = 'f32[1,1]{1,0:T(1,128)S(6)}', space=smem, size = 0x200, scoped, tag = 'scoped memory for frequency_filter.1']
  %s0 = inlined_call_operand.vmem [shape: f32[8,128,32], index: 0, kind: input, shape index: {}]
  %s1 = inlined_call_operand.vmem [shape: f32[1,1,32], index: 1, kind: input, shape index: {}]
  %s2 = inlined_call_operand.<no memory space> [shape: f32[1,1], index: 2, kind: input, shape index: {}]
  %s3 = inlined_call_operand.vmem [shape: f32[8,128], index: 3, kind: output, shape index: {}]
  %s4 = sld [smem:[#allocation0]]
  $region22: #{frequency_filter.1} parent=0
    _
  %s6 = ssub.s32 1, %s4
  %s7 = scalar_select 0, %s6, %s4
  %8 = sst [smem:[#allocation2]] %s2
  // Predicated region
  $region2: #{frequency_filter.1} parent=0 // pred_check
    _
  $region3: #{frequency_filter.1} parent=0 // pred_check_branch
    %10 = sbr.rel (0) target = $region5
  $region4: #{frequency_filter.1} parent=0 // pred_region
    _
  $region5: #{frequency_filter.1} parent=0 // pred_fallthru
    _
  // Predicated region
  $region6: #{frequency_filter.1} parent=0 // pred_check
    _
  $region7: #{frequency_filter.1} parent=0 // pred_check_branch
    %12 = sbr.rel (0) target = $region9
  $region8: #{frequency_filter.1} parent=0 // pred_region
    _
  $region9: #{frequency_filter.1} parent=0 // pred_fallthru
    _
  // Predicated region
  $region10: #{frequency_filter.1} parent=0 // pred_check
    _
  $region11: #{frequency_filter.1} parent=0 // pred_check_branch
    %14 = sbr.rel (0) target = $region13
  $region12: #{frequency_filter.1} parent=0 // pred_region
    _
  $region13: #{frequency_filter.1} parent=0 // pred_fallthru
    _
  %v15 = vld [vmem:[%s0] sm:$0xff]
  %v16 = vld [vmem:[%s0 + $0x8] sm:$0xff]
  %v17 = vld [vmem:[%s0 + $0x10] sm:$0xff]
  %v18 = vld [vmem:[%s0 + $0x18] sm:$0xff]
  %v19 = vld [vmem:[%s0 + $0x20] sm:$0xff]
  %v20 = vld [vmem:[%s0 + $0x28] sm:$0xff]
  %v21 = vld [vmem:[%s0 + $0x30] sm:$0xff]
  %v22 = vld [vmem:[%s0 + $0x38] sm:$0xff]
  %v23 = vld [vmem:[%s0 + $0x40] sm:$0xff]
  %v24 = vld [vmem:[%s0 + $0x48] sm:$0xff]
  %v25 = vld [vmem:[%s0 + $0x50] sm:$0xff]
  %v26 = vld [vmem:[%s0 + $0x58] sm:$0xff]
  %v27 = vld [vmem:[%s0 + $0x60] sm:$0xff]
  %v28 = vld [vmem:[%s0 + $0x68] sm:$0xff]
  %v29 = vld [vmem:[%s0 + $0x70] sm:$0xff]
  %v30 = vld [vmem:[%s0 + $0x78] sm:$0xff]
  %v31 = vld [vmem:[%s0 + $0x80] sm:$0xff]
  %v32 = vld [vmem:[%s0 + $0x88] sm:$0xff]
  %v33 = vld [vmem:[%s0 + $0x90] sm:$0xff]
  %v34 = vld [vmem:[%s0 + $0x98] sm:$0xff]
  %v35 = vld [vmem:[%s0 + $0xa0] sm:$0xff]
  %v36 = vld [vmem:[%s0 + $0xa8] sm:$0xff]
  %v37 = vld [vmem:[%s0 + $0xb0] sm:$0xff]
  %v38 = vld [vmem:[%s0 + $0xb8] sm:$0xff]
  %v39 = vld [vmem:[%s0 + $0xc0] sm:$0xff]
  %v40 = vld [vmem:[%s0 + $0xc8] sm:$0xff]
  %v41 = vld [vmem:[%s0 + $0xd0] sm:$0xff]
  %v42 = vld [vmem:[%s0 + $0xd8] sm:$0xff]
  %v43 = vld [vmem:[%s0 + $0xe0] sm:$0xff]
  %v44 = vld [vmem:[%s0 + $0xe8] sm:$0xff]
  %v45 = vld [vmem:[%s0 + $0xf0] sm:$0xff]
  %v46 = vld [vmem:[%s0 + $0xf8] sm:$0xff]
  %v47 = vld [vmem:[%s0 + $0x100] sm:$0xff]
  %v48 = vld [vmem:[%s0 + $0x108] sm:$0xff]
  %v49 = vld [vmem:[%s0 + $0x110] sm:$0xff]
  %v50 = vld [vmem:[%s0 + $0x118] sm:$0xff]
  %v51 = vld [vmem:[%s0 + $0x120] sm:$0xff]
  %v52 = vld [vmem:[%s0 + $0x128] sm:$0xff]
  %v53 = vld [vmem:[%s0 + $0x130] sm:$0xff]
  %v54 = vld [vmem:[%s0 + $0x138] sm:$0xff]
  %v55 = vld [vmem:[%s0 + $0x140] sm:$0xff]
  %v56 = vld [vmem:[%s0 + $0x148] sm:$0xff]
  %v57 = vld [vmem:[%s0 + $0x150] sm:$0xff]
  %v58 = vld [vmem:[%s0 + $0x158] sm:$0xff]
  %v59 = vld [vmem:[%s0 + $0x160] sm:$0xff]
  %v60 = vld [vmem:[%s0 + $0x168] sm:$0xff]
  %v61 = vld [vmem:[%s0 + $0x170] sm:$0xff]
  %v62 = vld [vmem:[%s0 + $0x178] sm:$0xff]
  %v63 = vld [vmem:[%s0 + $0x180] sm:$0xff]
  %v64 = vld [vmem:[%s0 + $0x188] sm:$0xff]
  %v65 = vld [vmem:[%s0 + $0x190] sm:$0xff]
  %v66 = vld [vmem:[%s0 + $0x198] sm:$0xff]
  %v67 = vld [vmem:[%s0 + $0x1a0] sm:$0xff]
  %v68 = vld [vmem:[%s0 + $0x1a8] sm:$0xff]
  %v69 = vld [vmem:[%s0 + $0x1b0] sm:$0xff]
  %v70 = vld [vmem:[%s0 + $0x1b8] sm:$0xff]
  %v71 = vld [vmem:[%s0 + $0x1c0] sm:$0xff]
  %v72 = vld [vmem:[%s0 + $0x1c8] sm:$0xff]
  %v73 = vld [vmem:[%s0 + $0x1d0] sm:$0xff]
  %v74 = vld [vmem:[%s0 + $0x1d8] sm:$0xff]
  %v75 = vld [vmem:[%s0 + $0x1e0] sm:$0xff]
  %v76 = vld [vmem:[%s0 + $0x1e8] sm:$0xff]
  %v77 = vld [vmem:[%s0 + $0x1f0] sm:$0xff]
  %v78 = vld [vmem:[%s0 + $0x1f8] sm:$0xff]
  %v79 = vld [vmem:[%s0 + $0x200] sm:$0xff]
  %v80 = vld [vmem:[%s0 + $0x208] sm:$0xff]
  %v81 = vld [vmem:[%s0 + $0x210] sm:$0xff]
  %v82 = vld [vmem:[%s0 + $0x218] sm:$0xff]
  %v83 = vld [vmem:[%s0 + $0x220] sm:$0xff]
  %v84 = vld [vmem:[%s0 + $0x228] sm:$0xff]
  %v85 = vld [vmem:[%s0 + $0x230] sm:$0xff]
  %v86 = vld [vmem:[%s0 + $0x238] sm:$0xff]
  %v87 = vld [vmem:[%s0 + $0x240] sm:$0xff]
  %v88 = vld [vmem:[%s0 + $0x248] sm:$0xff]
  %v89 = vld [vmem:[%s0 + $0x250] sm:$0xff]
  %v90 = vld [vmem:[%s0 + $0x258] sm:$0xff]
  %v91 = vld [vmem:[%s0 + $0x260] sm:$0xff]
  %v92 = vld [vmem:[%s0 + $0x268] sm:$0xff]
  %v93 = vld [vmem:[%s0 + $0x270] sm:$0xff]
  %v94 = vld [vmem:[%s0 + $0x278] sm:$0xff]
  %v95 = vld [vmem:[%s0 + $0x280] sm:$0xff]
  %v96 = vld [vmem:[%s0 + $0x288] sm:$0xff]
  %v97 = vld [vmem:[%s0 + $0x290] sm:$0xff]
  %v98 = vld [vmem:[%s0 + $0x298] sm:$0xff]
  %v99 = vld [vmem:[%s0 + $0x2a0] sm:$0xff]
  %v100 = vld [vmem:[%s0 + $0x2a8] sm:$0xff]
  %v101 = vld [vmem:[%s0 + $0x2b0] sm:$0xff]
  %v102 = vld [vmem:[%s0 + $0x2b8] sm:$0xff]
  %v103 = vld [vmem:[%s0 + $0x2c0] sm:$0xff]
  %v104 = vld [vmem:[%s0 + $0x2c8] sm:$0xff]
  %v105 = vld [vmem:[%s0 + $0x2d0] sm:$0xff]
  %v106 = vld [vmem:[%s0 + $0x2d8] sm:$0xff]
  %v107 = vld [vmem:[%s0 + $0x2e0] sm:$0xff]
  %v108 = vld [vmem:[%s0 + $0x2e8] sm:$0xff]
  %v109 = vld [vmem:[%s0 + $0x2f0] sm:$0xff]
  %v110 = vld [vmem:[%s0 + $0x2f8] sm:$0xff]
  %v111 = vld [vmem:[%s0 + $0x300] sm:$0xff]
  %v112 = vld [vmem:[%s0 + $0x308] sm:$0xff]
  %v113 = vld [vmem:[%s0 + $0x310] sm:$0xff]
  %v114 = vld [vmem:[%s0 + $0x318] sm:$0xff]
  %v115 = vld [vmem:[%s0 + $0x320] sm:$0xff]
  %v116 = vld [vmem:[%s0 + $0x328] sm:$0xff]
  %v117 = vld [vmem:[%s0 + $0x330] sm:$0xff]
  %v118 = vld [vmem:[%s0 + $0x338] sm:$0xff]
  %v119 = vld [vmem:[%s0 + $0x340] sm:$0xff]
  %v120 = vld [vmem:[%s0 + $0x348] sm:$0xff]
  %v121 = vld [vmem:[%s0 + $0x350] sm:$0xff]
  %v122 = vld [vmem:[%s0 + $0x358] sm:$0xff]
  %v123 = vld [vmem:[%s0 + $0x360] sm:$0xff]
  %v124 = vld [vmem:[%s0 + $0x368] sm:$0xff]
  %v125 = vld [vmem:[%s0 + $0x370] sm:$0xff]
  %v126 = vld [vmem:[%s0 + $0x378] sm:$0xff]
  %v127 = vld [vmem:[%s0 + $0x380] sm:$0xff]
  %v128 = vld [vmem:[%s0 + $0x388] sm:$0xff]
  %v129 = vld [vmem:[%s0 + $0x390] sm:$0xff]
  %v130 = vld [vmem:[%s0 + $0x398] sm:$0xff]
  %v131 = vld [vmem:[%s0 + $0x3a0] sm:$0xff]
  %v132 = vld [vmem:[%s0 + $0x3a8] sm:$0xff]
  %v133 = vld [vmem:[%s0 + $0x3b0] sm:$0xff]
  %v134 = vld [vmem:[%s0 + $0x3b8] sm:$0xff]
  %v135 = vld [vmem:[%s0 + $0x3c0] sm:$0xff]
  %v136 = vld [vmem:[%s0 + $0x3c8] sm:$0xff]
  %v137 = vld [vmem:[%s0 + $0x3d0] sm:$0xff]
  %v138 = vld [vmem:[%s0 + $0x3d8] sm:$0xff]
  %v139 = vld [vmem:[%s0 + $0x3e0] sm:$0xff]
  %v140 = vld [vmem:[%s0 + $0x3e8] sm:$0xff]
  %v141 = vld [vmem:[%s0 + $0x3f0] sm:$0xff]
  %v142 = vld [vmem:[%s0 + $0x3f8] sm:$0xff]
  %v143 = vld [vmem:[%s1] sm:$0x1]
  %v145 = vlaneseq
  %v146 = vshrl.u32 %v145, 7
  %v147 = vsub.s32 0, %v146
  %v148 = vrot.slane %v143, %v147
  %v150 = vmul.f32 %v15, %v148
  %v151 = vmul.f32 %v16, %v148
  %v152 = vmul.f32 %v17, %v148
  %v153 = vmul.f32 %v18, %v148
  %v154 = vmul.f32 %v19, %v148
  %v155 = vmul.f32 %v20, %v148
  %v156 = vmul.f32 %v21, %v148
  %v157 = vmul.f32 %v22, %v148
  %v158 = vmul.f32 %v23, %v148
  %v159 = vmul.f32 %v24, %v148
  %v160 = vmul.f32 %v25, %v148
  %v161 = vmul.f32 %v26, %v148
  %v162 = vmul.f32 %v27, %v148
  %v163 = vmul.f32 %v28, %v148
  %v164 = vmul.f32 %v29, %v148
  %v165 = vmul.f32 %v30, %v148
  %v166 = vmul.f32 %v31, %v148
  %v167 = vmul.f32 %v32, %v148
  %v168 = vmul.f32 %v33, %v148
  %v169 = vmul.f32 %v34, %v148
  %v170 = vmul.f32 %v35, %v148
  %v171 = vmul.f32 %v36, %v148
  %v172 = vmul.f32 %v37, %v148
  %v173 = vmul.f32 %v38, %v148
  %v174 = vmul.f32 %v39, %v148
  %v175 = vmul.f32 %v40, %v148
  %v176 = vmul.f32 %v41, %v148
  %v177 = vmul.f32 %v42, %v148
  %v178 = vmul.f32 %v43, %v148
  %v179 = vmul.f32 %v44, %v148
  %v180 = vmul.f32 %v45, %v148
  %v181 = vmul.f32 %v46, %v148
  %v182 = vmul.f32 %v47, %v148
  %v183 = vmul.f32 %v48, %v148
  %v184 = vmul.f32 %v49, %v148
  %v185 = vmul.f32 %v50, %v148
  %v186 = vmul.f32 %v51, %v148
  %v187 = vmul.f32 %v52, %v148
  %v188 = vmul.f32 %v53, %v148
  %v189 = vmul.f32 %v54, %v148
  %v190 = vmul.f32 %v55, %v148
  %v191 = vmul.f32 %v56, %v148
  %v192 = vmul.f32 %v57, %v148
  %v193 = vmul.f32 %v58, %v148
  %v194 = vmul.f32 %v59, %v148
  %v195 = vmul.f32 %v60, %v148
  %v196 = vmul.f32 %v61, %v148
  %v197 = vmul.f32 %v62, %v148
  %v198 = vmul.f32 %v63, %v148
  %v199 = vmul.f32 %v64, %v148
  %v200 = vmul.f32 %v65, %v148
  %v201 = vmul.f32 %v66, %v148
  %v202 = vmul.f32 %v67, %v148
  %v203 = vmul.f32 %v68, %v148
  %v204 = vmul.f32 %v69, %v148
  %v205 = vmul.f32 %v70, %v148
  %v206 = vmul.f32 %v71, %v148
  %v207 = vmul.f32 %v72, %v148
  %v208 = vmul.f32 %v73, %v148
  %v209 = vmul.f32 %v74, %v148
  %v210 = vmul.f32 %v75, %v148
  %v211 = vmul.f32 %v76, %v148
  %v212 = vmul.f32 %v77, %v148
  %v213 = vmul.f32 %v78, %v148
  %v214 = vmul.f32 %v79, %v148
  %v215 = vmul.f32 %v80, %v148
  %v216 = vmul.f32 %v81, %v148
  %v217 = vmul.f32 %v82, %v148
  %v218 = vmul.f32 %v83, %v148
  %v219 = vmul.f32 %v84, %v148
  %v220 = vmul.f32 %v85, %v148
  %v221 = vmul.f32 %v86, %v148
  %v222 = vmul.f32 %v87, %v148
  %v223 = vmul.f32 %v88, %v148
  %v224 = vmul.f32 %v89, %v148
  %v225 = vmul.f32 %v90, %v148
  %v226 = vmul.f32 %v91, %v148
  %v227 = vmul.f32 %v92, %v148
  %v228 = vmul.f32 %v93, %v148
  %v229 = vmul.f32 %v94, %v148
  %v230 = vmul.f32 %v95, %v148
  %v231 = vmul.f32 %v96, %v148
  %v232 = vmul.f32 %v97, %v148
  %v233 = vmul.f32 %v98, %v148
  %v234 = vmul.f32 %v99, %v148
  %v235 = vmul.f32 %v100, %v148
  %v236 = vmul.f32 %v101, %v148
  %v237 = vmul.f32 %v102, %v148
  %v238 = vmul.f32 %v103, %v148
  %v239 = vmul.f32 %v104, %v148
  %v240 = vmul.f32 %v105, %v148
  %v241 = vmul.f32 %v106, %v148
  %v242 = vmul.f32 %v107, %v148
  %v243 = vmul.f32 %v108, %v148
  %v244 = vmul.f32 %v109, %v148
  %v245 = vmul.f32 %v110, %v148
  %v246 = vmul.f32 %v111, %v148
  %v247 = vmul.f32 %v112, %v148
  %v248 = vmul.f32 %v113, %v148
  %v249 = vmul.f32 %v114, %v148
  %v250 = vmul.f32 %v115, %v148
  %v251 = vmul.f32 %v116, %v148
  %v252 = vmul.f32 %v117, %v148
  %v253 = vmul.f32 %v118, %v148
  %v254 = vmul.f32 %v119, %v148
  %v255 = vmul.f32 %v120, %v148
  %v256 = vmul.f32 %v121, %v148
  %v257 = vmul.f32 %v122, %v148
  %v258 = vmul.f32 %v123, %v148
  %v259 = vmul.f32 %v124, %v148
  %v260 = vmul.f32 %v125, %v148
  %v261 = vmul.f32 %v126, %v148
  %v262 = vmul.f32 %v127, %v148
  %v263 = vmul.f32 %v128, %v148
  %v264 = vmul.f32 %v129, %v148
  %v265 = vmul.f32 %v130, %v148
  %v266 = vmul.f32 %v131, %v148
  %v267 = vmul.f32 %v132, %v148
  %v268 = vmul.f32 %v133, %v148
  %v269 = vmul.f32 %v134, %v148
  %v270 = vmul.f32 %v135, %v148
  %v271 = vmul.f32 %v136, %v148
  %v272 = vmul.f32 %v137, %v148
  %v273 = vmul.f32 %v138, %v148
  %v274 = vmul.f32 %v139, %v148
  %v275 = vmul.f32 %v140, %v148
  %v276 = vmul.f32 %v141, %v148
  %v277 = vmul.f32 %v142, %v148
  %vm278 = vcmask 261120
  %v279 = vsel %vm278, %v150, 0.0
  %280 = vadd.xlane.f32.xlu0 %v279
  %v281 = vpop.xlane.xlu0 %280
  %v282 = vsel %vm278, %v151, 0.0
  %283 = vadd.xlane.f32.xlu0 %v282
  %v284 = vpop.xlane.xlu0 %283
  %v285 = vsel %vm278, %v152, 0.0
  %286 = vadd.xlane.f32.xlu0 %v285
  %v287 = vpop.xlane.xlu0 %286
  %v288 = vsel %vm278, %v153, 0.0
  %289 = vadd.xlane.f32.xlu0 %v288
  %v290 = vpop.xlane.xlu0 %289
  %v291 = vsel %vm278, %v154, 0.0
  %292 = vadd.xlane.f32.xlu0 %v291
  %v293 = vpop.xlane.xlu0 %292
  %v294 = vsel %vm278, %v155, 0.0
  %295 = vadd.xlane.f32.xlu0 %v294
  %v296 = vpop.xlane.xlu0 %295
  %v297 = vsel %vm278, %v156, 0.0
  %298 = vadd.xlane.f32.xlu0 %v297
  %v299 = vpop.xlane.xlu0 %298
  %v300 = vsel %vm278, %v157, 0.0
  %301 = vadd.xlane.f32.xlu0 %v300
  %v302 = vpop.xlane.xlu0 %301
  %v303 = vsel %vm278, %v158, 0.0
  %304 = vadd.xlane.f32.xlu0 %v303
  %v305 = vpop.xlane.xlu0 %304
  %v306 = vsel %vm278, %v159, 0.0
  %307 = vadd.xlane.f32.xlu0 %v306
  %v308 = vpop.xlane.xlu0 %307
  %v309 = vsel %vm278, %v160, 0.0
  %310 = vadd.xlane.f32.xlu0 %v309
  %v311 = vpop.xlane.xlu0 %310
  %v312 = vsel %vm278, %v161, 0.0
  %313 = vadd.xlane.f32.xlu0 %v312
  %v314 = vpop.xlane.xlu0 %313
  %v315 = vsel %vm278, %v162, 0.0
  %316 = vadd.xlane.f32.xlu0 %v315
  %v317 = vpop.xlane.xlu0 %316
  %v318 = vsel %vm278, %v163, 0.0
  %319 = vadd.xlane.f32.xlu0 %v318
  %v320 = vpop.xlane.xlu0 %319
  %v321 = vsel %vm278, %v164, 0.0
  %322 = vadd.xlane.f32.xlu0 %v321
  %v323 = vpop.xlane.xlu0 %322
  %v324 = vsel %vm278, %v165, 0.0
  %325 = vadd.xlane.f32.xlu0 %v324
  %v326 = vpop.xlane.xlu0 %325
  %v327 = vsel %vm278, %v166, 0.0
  %328 = vadd.xlane.f32.xlu0 %v327
  %v329 = vpop.xlane.xlu0 %328
  %v330 = vsel %vm278, %v167, 0.0
  %331 = vadd.xlane.f32.xlu0 %v330
  %v332 = vpop.xlane.xlu0 %331
  %v333 = vsel %vm278, %v168, 0.0
  %334 = vadd.xlane.f32.xlu0 %v333
  %v335 = vpop.xlane.xlu0 %334
  %v336 = vsel %vm278, %v169, 0.0
  %337 = vadd.xlane.f32.xlu0 %v336
  %v338 = vpop.xlane.xlu0 %337
  %v339 = vsel %vm278, %v170, 0.0
  %340 = vadd.xlane.f32.xlu0 %v339
  %v341 = vpop.xlane.xlu0 %340
  %v342 = vsel %vm278, %v171, 0.0
  %343 = vadd.xlane.f32.xlu0 %v342
  %v344 = vpop.xlane.xlu0 %343
  %v345 = vsel %vm278, %v172, 0.0
  %346 = vadd.xlane.f32.xlu0 %v345
  %v347 = vpop.xlane.xlu0 %346
  %v348 = vsel %vm278, %v173, 0.0
  %349 = vadd.xlane.f32.xlu0 %v348
  %v350 = vpop.xlane.xlu0 %349
  %v351 = vsel %vm278, %v174, 0.0
  %352 = vadd.xlane.f32.xlu0 %v351
  %v353 = vpop.xlane.xlu0 %352
  %v354 = vsel %vm278, %v175, 0.0
  %355 = vadd.xlane.f32.xlu0 %v354
  %v356 = vpop.xlane.xlu0 %355
  %v357 = vsel %vm278, %v176, 0.0
  %358 = vadd.xlane.f32.xlu0 %v357
  %v359 = vpop.xlane.xlu0 %358
  %v360 = vsel %vm278, %v177, 0.0
  %361 = vadd.xlane.f32.xlu0 %v360
  %v362 = vpop.xlane.xlu0 %361
  %v363 = vsel %vm278, %v178, 0.0
  %364 = vadd.xlane.f32.xlu0 %v363
  %v365 = vpop.xlane.xlu0 %364
  %v366 = vsel %vm278, %v179, 0.0
  %367 = vadd.xlane.f32.xlu0 %v366
  %v368 = vpop.xlane.xlu0 %367
  %v369 = vsel %vm278, %v180, 0.0
  %370 = vadd.xlane.f32.xlu0 %v369
  %v371 = vpop.xlane.xlu0 %370
  %v372 = vsel %vm278, %v181, 0.0
  %373 = vadd.xlane.f32.xlu0 %v372
  %v374 = vpop.xlane.xlu0 %373
  %v375 = vsel %vm278, %v182, 0.0
  %376 = vadd.xlane.f32.xlu0 %v375
  %v377 = vpop.xlane.xlu0 %376
  %v378 = vsel %vm278, %v183, 0.0
  %379 = vadd.xlane.f32.xlu0 %v378
  %v380 = vpop.xlane.xlu0 %379
  %v381 = vsel %vm278, %v184, 0.0
  %382 = vadd.xlane.f32.xlu0 %v381
  %v383 = vpop.xlane.xlu0 %382
  %v384 = vsel %vm278, %v185, 0.0
  %385 = vadd.xlane.f32.xlu0 %v384
  %v386 = vpop.xlane.xlu0 %385
  %v387 = vsel %vm278, %v186, 0.0
  %388 = vadd.xlane.f32.xlu0 %v387
  %v389 = vpop.xlane.xlu0 %388
  %v390 = vsel %vm278, %v187, 0.0
  %391 = vadd.xlane.f32.xlu0 %v390
  %v392 = vpop.xlane.xlu0 %391
  %v393 = vsel %vm278, %v188, 0.0
  %394 = vadd.xlane.f32.xlu0 %v393
  %v395 = vpop.xlane.xlu0 %394
  %v396 = vsel %vm278, %v189, 0.0
  %397 = vadd.xlane.f32.xlu0 %v396
  %v398 = vpop.xlane.xlu0 %397
  %v399 = vsel %vm278, %v190, 0.0
  %400 = vadd.xlane.f32.xlu0 %v399
  %v401 = vpop.xlane.xlu0 %400
  %v402 = vsel %vm278, %v191, 0.0
  %403 = vadd.xlane.f32.xlu0 %v402
  %v404 = vpop.xlane.xlu0 %403
  %v405 = vsel %vm278, %v192, 0.0
  %406 = vadd.xlane.f32.xlu0 %v405
  %v407 = vpop.xlane.xlu0 %406
  %v408 = vsel %vm278, %v193, 0.0
  %409 = vadd.xlane.f32.xlu0 %v408
  %v410 = vpop.xlane.xlu0 %409
  %v411 = vsel %vm278, %v194, 0.0
  %412 = vadd.xlane.f32.xlu0 %v411
  %v413 = vpop.xlane.xlu0 %412
  %v414 = vsel %vm278, %v195, 0.0
  %415 = vadd.xlane.f32.xlu0 %v414
  %v416 = vpop.xlane.xlu0 %415
  %v417 = vsel %vm278, %v196, 0.0
  %418 = vadd.xlane.f32.xlu0 %v417
  %v419 = vpop.xlane.xlu0 %418
  %v420 = vsel %vm278, %v197, 0.0
  %421 = vadd.xlane.f32.xlu0 %v420
  %v422 = vpop.xlane.xlu0 %421
  %v423 = vsel %vm278, %v198, 0.0
  %424 = vadd.xlane.f32.xlu0 %v423
  %v425 = vpop.xlane.xlu0 %424
  %v426 = vsel %vm278, %v199, 0.0
  %427 = vadd.xlane.f32.xlu0 %v426
  %v428 = vpop.xlane.xlu0 %427
  %v429 = vsel %vm278, %v200, 0.0
  %430 = vadd.xlane.f32.xlu0 %v429
  %v431 = vpop.xlane.xlu0 %430
  %v432 = vsel %vm278, %v201, 0.0
  %433 = vadd.xlane.f32.xlu0 %v432
  %v434 = vpop.xlane.xlu0 %433
  %v435 = vsel %vm278, %v202, 0.0
  %436 = vadd.xlane.f32.xlu0 %v435
  %v437 = vpop.xlane.xlu0 %436
  %v438 = vsel %vm278, %v203, 0.0
  %439 = vadd.xlane.f32.xlu0 %v438
  %v440 = vpop.xlane.xlu0 %439
  %v441 = vsel %vm278, %v204, 0.0
  %442 = vadd.xlane.f32.xlu0 %v441
  %v443 = vpop.xlane.xlu0 %442
  %v444 = vsel %vm278, %v205, 0.0
  %445 = vadd.xlane.f32.xlu0 %v444
  %v446 = vpop.xlane.xlu0 %445
  %v447 = vsel %vm278, %v206, 0.0
  %448 = vadd.xlane.f32.xlu0 %v447
  %v449 = vpop.xlane.xlu0 %448
  %v450 = vsel %vm278, %v207, 0.0
  %451 = vadd.xlane.f32.xlu0 %v450
  %v452 = vpop.xlane.xlu0 %451
  %v453 = vsel %vm278, %v208, 0.0
  %454 = vadd.xlane.f32.xlu0 %v453
  %v455 = vpop.xlane.xlu0 %454
  %v456 = vsel %vm278, %v209, 0.0
  %457 = vadd.xlane.f32.xlu0 %v456
  %v458 = vpop.xlane.xlu0 %457
  %v459 = vsel %vm278, %v210, 0.0
  %460 = vadd.xlane.f32.xlu0 %v459
  %v461 = vpop.xlane.xlu0 %460
  %v462 = vsel %vm278, %v211, 0.0
  %463 = vadd.xlane.f32.xlu0 %v462
  %v464 = vpop.xlane.xlu0 %463
  %v465 = vsel %vm278, %v212, 0.0
  %466 = vadd.xlane.f32.xlu0 %v465
  %v467 = vpop.xlane.xlu0 %466
  %v468 = vsel %vm278, %v213, 0.0
  %469 = vadd.xlane.f32.xlu0 %v468
  %v470 = vpop.xlane.xlu0 %469
  %v471 = vsel %vm278, %v214, 0.0
  %472 = vadd.xlane.f32.xlu0 %v471
  %v473 = vpop.xlane.xlu0 %472
  %v474 = vsel %vm278, %v215, 0.0
  %475 = vadd.xlane.f32.xlu0 %v474
  %v476 = vpop.xlane.xlu0 %475
  %v477 = vsel %vm278, %v216, 0.0
  %478 = vadd.xlane.f32.xlu0 %v477
  %v479 = vpop.xlane.xlu0 %478
  %v480 = vsel %vm278, %v217, 0.0
  %481 = vadd.xlane.f32.xlu0 %v480
  %v482 = vpop.xlane.xlu0 %481
  %v483 = vsel %vm278, %v218, 0.0
  %484 = vadd.xlane.f32.xlu0 %v483
  %v485 = vpop.xlane.xlu0 %484
  %v486 = vsel %vm278, %v219, 0.0
  %487 = vadd.xlane.f32.xlu0 %v486
  %v488 = vpop.xlane.xlu0 %487
  %v489 = vsel %vm278, %v220, 0.0
  %490 = vadd.xlane.f32.xlu0 %v489
  %v491 = vpop.xlane.xlu0 %490
  %v492 = vsel %vm278, %v221, 0.0
  %493 = vadd.xlane.f32.xlu0 %v492
  %v494 = vpop.xlane.xlu0 %493
  %v495 = vsel %vm278, %v222, 0.0
  %496 = vadd.xlane.f32.xlu0 %v495
  %v497 = vpop.xlane.xlu0 %496
  %v498 = vsel %vm278, %v223, 0.0
  %499 = vadd.xlane.f32.xlu0 %v498
  %v500 = vpop.xlane.xlu0 %499
  %v501 = vsel %vm278, %v224, 0.0
  %502 = vadd.xlane.f32.xlu0 %v501
  %v503 = vpop.xlane.xlu0 %502
  %v504 = vsel %vm278, %v225, 0.0
  %505 = vadd.xlane.f32.xlu0 %v504
  %v506 = vpop.xlane.xlu0 %505
  %v507 = vsel %vm278, %v226, 0.0
  %508 = vadd.xlane.f32.xlu0 %v507
  %v509 = vpop.xlane.xlu0 %508
  %v510 = vsel %vm278, %v227, 0.0
  %511 = vadd.xlane.f32.xlu0 %v510
  %v512 = vpop.xlane.xlu0 %511
  %v513 = vsel %vm278, %v228, 0.0
  %514 = vadd.xlane.f32.xlu0 %v513
  %v515 = vpop.xlane.xlu0 %514
  %v516 = vsel %vm278, %v229, 0.0
  %517 = vadd.xlane.f32.xlu0 %v516
  %v518 = vpop.xlane.xlu0 %517
  %v519 = vsel %vm278, %v230, 0.0
  %520 = vadd.xlane.f32.xlu0 %v519
  %v521 = vpop.xlane.xlu0 %520
  %v522 = vsel %vm278, %v231, 0.0
  %523 = vadd.xlane.f32.xlu0 %v522
  %v524 = vpop.xlane.xlu0 %523
  %v525 = vsel %vm278, %v232, 0.0
  %526 = vadd.xlane.f32.xlu0 %v525
  %v527 = vpop.xlane.xlu0 %526
  %v528 = vsel %vm278, %v233, 0.0
  %529 = vadd.xlane.f32.xlu0 %v528
  %v530 = vpop.xlane.xlu0 %529
  %v531 = vsel %vm278, %v234, 0.0
  %532 = vadd.xlane.f32.xlu0 %v531
  %v533 = vpop.xlane.xlu0 %532
  %v534 = vsel %vm278, %v235, 0.0
  %535 = vadd.xlane.f32.xlu0 %v534
  %v536 = vpop.xlane.xlu0 %535
  %v537 = vsel %vm278, %v236, 0.0
  %538 = vadd.xlane.f32.xlu0 %v537
  %v539 = vpop.xlane.xlu0 %538
  %v540 = vsel %vm278, %v237, 0.0
  %541 = vadd.xlane.f32.xlu0 %v540
  %v542 = vpop.xlane.xlu0 %541
  %v543 = vsel %vm278, %v238, 0.0
  %544 = vadd.xlane.f32.xlu0 %v543
  %v545 = vpop.xlane.xlu0 %544
  %v546 = vsel %vm278, %v239, 0.0
  %547 = vadd.xlane.f32.xlu0 %v546
  %v548 = vpop.xlane.xlu0 %547
  %v549 = vsel %vm278, %v240, 0.0
  %550 = vadd.xlane.f32.xlu0 %v549
  %v551 = vpop.xlane.xlu0 %550
  %v552 = vsel %vm278, %v241, 0.0
  %553 = vadd.xlane.f32.xlu0 %v552
  %v554 = vpop.xlane.xlu0 %553
  %v555 = vsel %vm278, %v242, 0.0
  %556 = vadd.xlane.f32.xlu0 %v555
  %v557 = vpop.xlane.xlu0 %556
  %v558 = vsel %vm278, %v243, 0.0
  %559 = vadd.xlane.f32.xlu0 %v558
  %v560 = vpop.xlane.xlu0 %559
  %v561 = vsel %vm278, %v244, 0.0
  %562 = vadd.xlane.f32.xlu0 %v561
  %v563 = vpop.xlane.xlu0 %562
  %v564 = vsel %vm278, %v245, 0.0
  %565 = vadd.xlane.f32.xlu0 %v564
  %v566 = vpop.xlane.xlu0 %565
  %v567 = vsel %vm278, %v246, 0.0
  %568 = vadd.xlane.f32.xlu0 %v567
  %v569 = vpop.xlane.xlu0 %568
  %v570 = vsel %vm278, %v247, 0.0
  %571 = vadd.xlane.f32.xlu0 %v570
  %v572 = vpop.xlane.xlu0 %571
  %v573 = vsel %vm278, %v248, 0.0
  %574 = vadd.xlane.f32.xlu0 %v573
  %v575 = vpop.xlane.xlu0 %574
  %v576 = vsel %vm278, %v249, 0.0
  %577 = vadd.xlane.f32.xlu0 %v576
  %v578 = vpop.xlane.xlu0 %577
  %v579 = vsel %vm278, %v250, 0.0
  %580 = vadd.xlane.f32.xlu0 %v579
  %v581 = vpop.xlane.xlu0 %580
  %v582 = vsel %vm278, %v251, 0.0
  %583 = vadd.xlane.f32.xlu0 %v582
  %v584 = vpop.xlane.xlu0 %583
  %v585 = vsel %vm278, %v252, 0.0
  %586 = vadd.xlane.f32.xlu0 %v585
  %v587 = vpop.xlane.xlu0 %586
  %v588 = vsel %vm278, %v253, 0.0
  %589 = vadd.xlane.f32.xlu0 %v588
  %v590 = vpop.xlane.xlu0 %589
  %v591 = vsel %vm278, %v254, 0.0
  %592 = vadd.xlane.f32.xlu0 %v591
  %v593 = vpop.xlane.xlu0 %592
  %v594 = vsel %vm278, %v255, 0.0
  %595 = vadd.xlane.f32.xlu0 %v594
  %v596 = vpop.xlane.xlu0 %595
  %v597 = vsel %vm278, %v256, 0.0
  %598 = vadd.xlane.f32.xlu0 %v597
  %v599 = vpop.xlane.xlu0 %598
  %v600 = vsel %vm278, %v257, 0.0
  %601 = vadd.xlane.f32.xlu0 %v600
  %v602 = vpop.xlane.xlu0 %601
  %v603 = vsel %vm278, %v258, 0.0
  %604 = vadd.xlane.f32.xlu0 %v603
  %v605 = vpop.xlane.xlu0 %604
  %v606 = vsel %vm278, %v259, 0.0
  %607 = vadd.xlane.f32.xlu0 %v606
  %v608 = vpop.xlane.xlu0 %607
  %v609 = vsel %vm278, %v260, 0.0
  %610 = vadd.xlane.f32.xlu0 %v609
  %v611 = vpop.xlane.xlu0 %610
  %v612 = vsel %vm278, %v261, 0.0
  %613 = vadd.xlane.f32.xlu0 %v612
  %v614 = vpop.xlane.xlu0 %613
  %v615 = vsel %vm278, %v262, 0.0
  %616 = vadd.xlane.f32.xlu0 %v615
  %v617 = vpop.xlane.xlu0 %616
  %v618 = vsel %vm278, %v263, 0.0
  %619 = vadd.xlane.f32.xlu0 %v618
  %v620 = vpop.xlane.xlu0 %619
  %v621 = vsel %vm278, %v264, 0.0
  %622 = vadd.xlane.f32.xlu0 %v621
  %v623 = vpop.xlane.xlu0 %622
  %v624 = vsel %vm278, %v265, 0.0
  %625 = vadd.xlane.f32.xlu0 %v624
  %v626 = vpop.xlane.xlu0 %625
  %v627 = vsel %vm278, %v266, 0.0
  %628 = vadd.xlane.f32.xlu0 %v627
  %v629 = vpop.xlane.xlu0 %628
  %v630 = vsel %vm278, %v267, 0.0
  %631 = vadd.xlane.f32.xlu0 %v630
  %v632 = vpop.xlane.xlu0 %631
  %v633 = vsel %vm278, %v268, 0.0
  %634 = vadd.xlane.f32.xlu0 %v633
  %v635 = vpop.xlane.xlu0 %634
  %v636 = vsel %vm278, %v269, 0.0
  %637 = vadd.xlane.f32.xlu0 %v636
  %v638 = vpop.xlane.xlu0 %637
  %v639 = vsel %vm278, %v270, 0.0
  %640 = vadd.xlane.f32.xlu0 %v639
  %v641 = vpop.xlane.xlu0 %640
  %v642 = vsel %vm278, %v271, 0.0
  %643 = vadd.xlane.f32.xlu0 %v642
  %v644 = vpop.xlane.xlu0 %643
  %v645 = vsel %vm278, %v272, 0.0
  %646 = vadd.xlane.f32.xlu0 %v645
  %v647 = vpop.xlane.xlu0 %646
  %v648 = vsel %vm278, %v273, 0.0
  %649 = vadd.xlane.f32.xlu0 %v648
  %v650 = vpop.xlane.xlu0 %649
  %v651 = vsel %vm278, %v274, 0.0
  %652 = vadd.xlane.f32.xlu0 %v651
  %v653 = vpop.xlane.xlu0 %652
  %v654 = vsel %vm278, %v275, 0.0
  %655 = vadd.xlane.f32.xlu0 %v654
  %v656 = vpop.xlane.xlu0 %655
  %v657 = vsel %vm278, %v276, 0.0
  %658 = vadd.xlane.f32.xlu0 %v657
  %v659 = vpop.xlane.xlu0 %658
  %v660 = vsel %vm278, %v277, 0.0
  %661 = vadd.xlane.f32.xlu0 %v660
  %v662 = vpop.xlane.xlu0 %661
  %s663 = sld [smem:[#allocation2]]
  %v664 = vstv %s663
  %v665 = vadd.f32 %v281, %v664
  %v666 = vadd.f32 %v284, %v664
  %v667 = vadd.f32 %v287, %v664
  %v668 = vadd.f32 %v290, %v664
  %v669 = vadd.f32 %v293, %v664
  %v670 = vadd.f32 %v296, %v664
  %v671 = vadd.f32 %v299, %v664
  %v672 = vadd.f32 %v302, %v664
  %v673 = vadd.f32 %v305, %v664
  %v674 = vadd.f32 %v308, %v664
  %v675 = vadd.f32 %v311, %v664
  %v676 = vadd.f32 %v314, %v664
  %v677 = vadd.f32 %v317, %v664
  %v678 = vadd.f32 %v320, %v664
  %v679 = vadd.f32 %v323, %v664
  %v680 = vadd.f32 %v326, %v664
  %v681 = vadd.f32 %v329, %v664
  %v682 = vadd.f32 %v332, %v664
  %v683 = vadd.f32 %v335, %v664
  %v684 = vadd.f32 %v338, %v664
  %v685 = vadd.f32 %v341, %v664
  %v686 = vadd.f32 %v344, %v664
  %v687 = vadd.f32 %v347, %v664
  %v688 = vadd.f32 %v350, %v664
  %v689 = vadd.f32 %v353, %v664
  %v690 = vadd.f32 %v356, %v664
  %v691 = vadd.f32 %v359, %v664
  %v692 = vadd.f32 %v362, %v664
  %v693 = vadd.f32 %v365, %v664
  %v694 = vadd.f32 %v368, %v664
  %v695 = vadd.f32 %v371, %v664
  %v696 = vadd.f32 %v374, %v664
  %v697 = vadd.f32 %v377, %v664
  %v698 = vadd.f32 %v380, %v664
  %v699 = vadd.f32 %v383, %v664
  %v700 = vadd.f32 %v386, %v664
  %v701 = vadd.f32 %v389, %v664
  %v702 = vadd.f32 %v392, %v664
  %v703 = vadd.f32 %v395, %v664
  %v704 = vadd.f32 %v398, %v664
  %v705 = vadd.f32 %v401, %v664
  %v706 = vadd.f32 %v404, %v664
  %v707 = vadd.f32 %v407, %v664
  %v708 = vadd.f32 %v410, %v664
  %v709 = vadd.f32 %v413, %v664
  %v710 = vadd.f32 %v416, %v664
  %v711 = vadd.f32 %v419, %v664
  %v712 = vadd.f32 %v422, %v664
  %v713 = vadd.f32 %v425, %v664
  %v714 = vadd.f32 %v428, %v664
  %v715 = vadd.f32 %v431, %v664
  %v716 = vadd.f32 %v434, %v664
  %v717 = vadd.f32 %v437, %v664
  %v718 = vadd.f32 %v440, %v664
  %v719 = vadd.f32 %v443, %v664
  %v720 = vadd.f32 %v446, %v664
  %v721 = vadd.f32 %v449, %v664
  %v722 = vadd.f32 %v452, %v664
  %v723 = vadd.f32 %v455, %v664
  %v724 = vadd.f32 %v458, %v664
  %v725 = vadd.f32 %v461, %v664
  %v726 = vadd.f32 %v464, %v664
  %v727 = vadd.f32 %v467, %v664
  %v728 = vadd.f32 %v470, %v664
  %v729 = vadd.f32 %v473, %v664
  %v730 = vadd.f32 %v476, %v664
  %v731 = vadd.f32 %v479, %v664
  %v732 = vadd.f32 %v482, %v664
  %v733 = vadd.f32 %v485, %v664
  %v734 = vadd.f32 %v488, %v664
  %v735 = vadd.f32 %v491, %v664
  %v736 = vadd.f32 %v494, %v664
  %v737 = vadd.f32 %v497, %v664
  %v738 = vadd.f32 %v500, %v664
  %v739 = vadd.f32 %v503, %v664
  %v740 = vadd.f32 %v506, %v664
  %v741 = vadd.f32 %v509, %v664
  %v742 = vadd.f32 %v512, %v664
  %v743 = vadd.f32 %v515, %v664
  %v744 = vadd.f32 %v518, %v664
  %v745 = vadd.f32 %v521, %v664
  %v746 = vadd.f32 %v524, %v664
  %v747 = vadd.f32 %v527, %v664
  %v748 = vadd.f32 %v530, %v664
  %v749 = vadd.f32 %v533, %v664
  %v750 = vadd.f32 %v536, %v664
  %v751 = vadd.f32 %v539, %v664
  %v752 = vadd.f32 %v542, %v664
  %v753 = vadd.f32 %v545, %v664
  %v754 = vadd.f32 %v548, %v664
  %v755 = vadd.f32 %v551, %v664
  %v756 = vadd.f32 %v554, %v664
  %v757 = vadd.f32 %v557, %v664
  %v758 = vadd.f32 %v560, %v664
  %v759 = vadd.f32 %v563, %v664
  %v760 = vadd.f32 %v566, %v664
  %v761 = vadd.f32 %v569, %v664
  %v762 = vadd.f32 %v572, %v664
  %v763 = vadd.f32 %v575, %v664
  %v764 = vadd.f32 %v578, %v664
  %v765 = vadd.f32 %v581, %v664
  %v766 = vadd.f32 %v584, %v664
  %v767 = vadd.f32 %v587, %v664
  %v768 = vadd.f32 %v590, %v664
  %v769 = vadd.f32 %v593, %v664
  %v770 = vadd.f32 %v596, %v664
  %v771 = vadd.f32 %v599, %v664
  %v772 = vadd.f32 %v602, %v664
  %v773 = vadd.f32 %v605, %v664
  %v774 = vadd.f32 %v608, %v664
  %v775 = vadd.f32 %v611, %v664
  %v776 = vadd.f32 %v614, %v664
  %v777 = vadd.f32 %v617, %v664
  %v778 = vadd.f32 %v620, %v664
  %v779 = vadd.f32 %v623, %v664
  %v780 = vadd.f32 %v626, %v664
  %v781 = vadd.f32 %v629, %v664
  %v782 = vadd.f32 %v632, %v664
  %v783 = vadd.f32 %v635, %v664
  %v784 = vadd.f32 %v638, %v664
  %v785 = vadd.f32 %v641, %v664
  %v786 = vadd.f32 %v644, %v664
  %v787 = vadd.f32 %v647, %v664
  %v788 = vadd.f32 %v650, %v664
  %v789 = vadd.f32 %v653, %v664
  %v790 = vadd.f32 %v656, %v664
  %v791 = vadd.f32 %v659, %v664
  %v792 = vadd.f32 %v662, %v664
  %v793 = vmax.f32 %v665, 0.0
  %v794 = vmax.f32 %v666, 0.0
  %v795 = vmax.f32 %v667, 0.0
  %v796 = vmax.f32 %v668, 0.0
  %v797 = vmax.f32 %v669, 0.0
  %v798 = vmax.f32 %v670, 0.0
  %v799 = vmax.f32 %v671, 0.0
  %v800 = vmax.f32 %v672, 0.0
  %v801 = vmax.f32 %v673, 0.0
  %v802 = vmax.f32 %v674, 0.0
  %v803 = vmax.f32 %v675, 0.0
  %v804 = vmax.f32 %v676, 0.0
  %v805 = vmax.f32 %v677, 0.0
  %v806 = vmax.f32 %v678, 0.0
  %v807 = vmax.f32 %v679, 0.0
  %v808 = vmax.f32 %v680, 0.0
  %v809 = vmax.f32 %v681, 0.0
  %v810 = vmax.f32 %v682, 0.0
  %v811 = vmax.f32 %v683, 0.0
  %v812 = vmax.f32 %v684, 0.0
  %v813 = vmax.f32 %v685, 0.0
  %v814 = vmax.f32 %v686, 0.0
  %v815 = vmax.f32 %v687, 0.0
  %v816 = vmax.f32 %v688, 0.0
  %v817 = vmax.f32 %v689, 0.0
  %v818 = vmax.f32 %v690, 0.0
  %v819 = vmax.f32 %v691, 0.0
  %v820 = vmax.f32 %v692, 0.0
  %v821 = vmax.f32 %v693, 0.0
  %v822 = vmax.f32 %v694, 0.0
  %v823 = vmax.f32 %v695, 0.0
  %v824 = vmax.f32 %v696, 0.0
  %v825 = vmax.f32 %v697, 0.0
  %v826 = vmax.f32 %v698, 0.0
  %v827 = vmax.f32 %v699, 0.0
  %v828 = vmax.f32 %v700, 0.0
  %v829 = vmax.f32 %v701, 0.0
  %v830 = vmax.f32 %v702, 0.0
  %v831 = vmax.f32 %v703, 0.0
  %v832 = vmax.f32 %v704, 0.0
  %v833 = vmax.f32 %v705, 0.0
  %v834 = vmax.f32 %v706, 0.0
  %v835 = vmax.f32 %v707, 0.0
  %v836 = vmax.f32 %v708, 0.0
  %v837 = vmax.f32 %v709, 0.0
  %v838 = vmax.f32 %v710, 0.0
  %v839 = vmax.f32 %v711, 0.0
  %v840 = vmax.f32 %v712, 0.0
  %v841 = vmax.f32 %v713, 0.0
  %v842 = vmax.f32 %v714, 0.0
  %v843 = vmax.f32 %v715, 0.0
  %v844 = vmax.f32 %v716, 0.0
  %v845 = vmax.f32 %v717, 0.0
  %v846 = vmax.f32 %v718, 0.0
  %v847 = vmax.f32 %v719, 0.0
  %v848 = vmax.f32 %v720, 0.0
  %v849 = vmax.f32 %v721, 0.0
  %v850 = vmax.f32 %v722, 0.0
  %v851 = vmax.f32 %v723, 0.0
  %v852 = vmax.f32 %v724, 0.0
  %v853 = vmax.f32 %v725, 0.0
  %v854 = vmax.f32 %v726, 0.0
  %v855 = vmax.f32 %v727, 0.0
  %v856 = vmax.f32 %v728, 0.0
  %v857 = vmax.f32 %v729, 0.0
  %v858 = vmax.f32 %v730, 0.0
  %v859 = vmax.f32 %v731, 0.0
  %v860 = vmax.f32 %v732, 0.0
  %v861 = vmax.f32 %v733, 0.0
  %v862 = vmax.f32 %v734, 0.0
  %v863 = vmax.f32 %v735, 0.0
  %v864 = vmax.f32 %v736, 0.0
  %v865 = vmax.f32 %v737, 0.0
  %v866 = vmax.f32 %v738, 0.0
  %v867 = vmax.f32 %v739, 0.0
  %v868 = vmax.f32 %v740, 0.0
  %v869 = vmax.f32 %v741, 0.0
  %v870 = vmax.f32 %v742, 0.0
  %v871 = vmax.f32 %v743, 0.0
  %v872 = vmax.f32 %v744, 0.0
  %v873 = vmax.f32 %v745, 0.0
  %v874 = vmax.f32 %v746, 0.0
  %v875 = vmax.f32 %v747, 0.0
  %v876 = vmax.f32 %v748, 0.0
  %v877 = vmax.f32 %v749, 0.0
  %v878 = vmax.f32 %v750, 0.0
  %v879 = vmax.f32 %v751, 0.0
  %v880 = vmax.f32 %v752, 0.0
  %v881 = vmax.f32 %v753, 0.0
  %v882 = vmax.f32 %v754, 0.0
  %v883 = vmax.f32 %v755, 0.0
  %v884 = vmax.f32 %v756, 0.0
  %v885 = vmax.f32 %v757, 0.0
  %v886 = vmax.f32 %v758, 0.0
  %v887 = vmax.f32 %v759, 0.0
  %v888 = vmax.f32 %v760, 0.0
  %v889 = vmax.f32 %v761, 0.0
  %v890 = vmax.f32 %v762, 0.0
  %v891 = vmax.f32 %v763, 0.0
  %v892 = vmax.f32 %v764, 0.0
  %v893 = vmax.f32 %v765, 0.0
  %v894 = vmax.f32 %v766, 0.0
  %v895 = vmax.f32 %v767, 0.0
  %v896 = vmax.f32 %v768, 0.0
  %v897 = vmax.f32 %v769, 0.0
  %v898 = vmax.f32 %v770, 0.0
  %v899 = vmax.f32 %v771, 0.0
  %v900 = vmax.f32 %v772, 0.0
  %v901 = vmax.f32 %v773, 0.0
  %v902 = vmax.f32 %v774, 0.0
  %v903 = vmax.f32 %v775, 0.0
  %v904 = vmax.f32 %v776, 0.0
  %v905 = vmax.f32 %v777, 0.0
  %v906 = vmax.f32 %v778, 0.0
  %v907 = vmax.f32 %v779, 0.0
  %v908 = vmax.f32 %v780, 0.0
  %v909 = vmax.f32 %v781, 0.0
  %v910 = vmax.f32 %v782, 0.0
  %v911 = vmax.f32 %v783, 0.0
  %v912 = vmax.f32 %v784, 0.0
  %v913 = vmax.f32 %v785, 0.0
  %v914 = vmax.f32 %v786, 0.0
  %v915 = vmax.f32 %v787, 0.0
  %v916 = vmax.f32 %v788, 0.0
  %v917 = vmax.f32 %v789, 0.0
  %v918 = vmax.f32 %v790, 0.0
  %v919 = vmax.f32 %v791, 0.0
  %v920 = vmax.f32 %v792, 0.0
  %v1049 = vlaneseq
  %v1050 = vand.u32 %v1049, 127
  %v1051 = vlaneseq
  %v1052 = vshrl.u32 %v1051, 7
  %v1053 = vsub.s32 %v1050, %v1052
  %v1054 = vrot.slane %v793, %v1053
  %v1055 = vadd.s32 %v1050, 4294967288
  %v1056 = vlaneseq
  %v1057 = vshrl.u32 %v1056, 7
  %v1058 = vsub.s32 %v1055, %v1057
  %v1059 = vrot.slane %v794, %v1058
  %vm1060 = vcmask 130112
  %v1061 = vsel %vm1060, %v1059, %v1054
  %v1062 = vadd.s32 %v1050, 4294967280
  %v1063 = vlaneseq
  %v1064 = vshrl.u32 %v1063, 7
  %v1065 = vsub.s32 %v1062, %v1064
  %v1066 = vrot.slane %v795, %v1065
  %vm1067 = vcmask 195712
  %v1068 = vsel %vm1067, %v1066, %v1061
  %v1069 = vadd.s32 %v1050, 4294967272
  %v1070 = vlaneseq
  %v1071 = vshrl.u32 %v1070, 7
  %v1072 = vsub.s32 %v1069, %v1071
  %v1073 = vrot.slane %v796, %v1072
  %vm1074 = vcmask 261312
  %v1075 = vsel %vm1074, %v1073, %v1068
  %v1076 = vadd.s32 %v1050, 4294967264
  %v1077 = vlaneseq
  %v1078 = vshrl.u32 %v1077, 7
  %v1079 = vsub.s32 %v1076, %v1078
  %v1080 = vrot.slane %v797, %v1079
  %vm1081 = vcmask 326912
  %v1082 = vsel %vm1081, %v1080, %v1075
  %v1083 = vadd.s32 %v1050, 4294967256
  %v1084 = vlaneseq
  %v1085 = vshrl.u32 %v1084, 7
  %v1086 = vsub.s32 %v1083, %v1085
  %v1087 = vrot.slane %v798, %v1086
  %vm1088 = vcmask 392512
  %v1089 = vsel %vm1088, %v1087, %v1082
  %v1090 = vadd.s32 %v1050, 4294967248
  %v1091 = vlaneseq
  %v1092 = vshrl.u32 %v1091, 7
  %v1093 = vsub.s32 %v1090, %v1092
  %v1094 = vrot.slane %v799, %v1093
  %vm1095 = vcmask 458112
  %v1096 = vsel %vm1095, %v1094, %v1089
  %v1097 = vadd.s32 %v1050, 4294967240
  %v1098 = vlaneseq
  %v1099 = vshrl.u32 %v1098, 7
  %v1100 = vsub.s32 %v1097, %v1099
  %v1101 = vrot.slane %v800, %v1100
  %vm1102 = vcmask 523712
  %v1103 = vsel %vm1102, %v1101, %v1096
  %v1104 = vadd.s32 %v1050, 4294967232
  %v1105 = vlaneseq
  %v1106 = vshrl.u32 %v1105, 7
  %v1107 = vsub.s32 %v1104, %v1106
  %v1108 = vrot.slane %v801, %v1107
  %vm1109 = vcmask 589312
  %v1110 = vsel %vm1109, %v1108, %v1103
  %v1111 = vadd.s32 %v1050, 4294967224
  %v1112 = vlaneseq
  %v1113 = vshrl.u32 %v1112, 7
  %v1114 = vsub.s32 %v1111, %v1113
  %v1115 = vrot.slane %v802, %v1114
  %vm1116 = vcmask 654912
  %v1117 = vsel %vm1116, %v1115, %v1110
  %v1118 = vadd.s32 %v1050, 4294967216
  %v1119 = vlaneseq
  %v1120 = vshrl.u32 %v1119, 7
  %v1121 = vsub.s32 %v1118, %v1120
  %v1122 = vrot.slane %v803, %v1121
  %vm1123 = vcmask 720512
  %v1124 = vsel %vm1123, %v1122, %v1117
  %v1125 = vadd.s32 %v1050, 4294967208
  %v1126 = vlaneseq
  %v1127 = vshrl.u32 %v1126, 7
  %v1128 = vsub.s32 %v1125, %v1127
  %v1129 = vrot.slane %v804, %v1128
  %vm1130 = vcmask 786112
  %v1131 = vsel %vm1130, %v1129, %v1124
  %v1132 = vadd.s32 %v1050, 4294967200
  %v1133 = vlaneseq
  %v1134 = vshrl.u32 %v1133, 7
  %v1135 = vsub.s32 %v1132, %v1134
  %v1136 = vrot.slane %v805, %v1135
  %vm1137 = vcmask 851712
  %v1138 = vsel %vm1137, %v1136, %v1131
  %v1139 = vadd.s32 %v1050, 4294967192
  %v1140 = vlaneseq
  %v1141 = vshrl.u32 %v1140, 7
  %v1142 = vsub.s32 %v1139, %v1141
  %v1143 = vrot.slane %v806, %v1142
  %vm1144 = vcmask 917312
  %v1145 = vsel %vm1144, %v1143, %v1138
  %v1146 = vadd.s32 %v1050, 4294967184
  %v1147 = vlaneseq
  %v1148 = vshrl.u32 %v1147, 7
  %v1149 = vsub.s32 %v1146, %v1148
  %v1150 = vrot.slane %v807, %v1149
  %vm1151 = vcmask 982912
  %v1152 = vsel %vm1151, %v1150, %v1145
  %v1153 = vadd.s32 %v1050, 4294967176
  %v1154 = vlaneseq
  %v1155 = vshrl.u32 %v1154, 7
  %v1156 = vsub.s32 %v1153, %v1155
  %v1157 = vrot.slane %v808, %v1156
  %vm1158 = vcmask 1048512
  %v1159 = vsel %vm1158, %v1157, %v1152
  %v1160 = vlaneseq
  %v1161 = vshrl.u32 %v1160, 7
  %v1162 = vsub.s32 %v1050, %v1161
  %v1163 = vrot.slane %v809, %v1162
  %v1164 = vlaneseq
  %v1165 = vshrl.u32 %v1164, 7
  %v1166 = vsub.s32 %v1055, %v1165
  %v1167 = vrot.slane %v810, %v1166
  %v1168 = vsel %vm1060, %v1167, %v1163
  %v1169 = vlaneseq
  %v1170 = vshrl.u32 %v1169, 7
  %v1171 = vsub.s32 %v1062, %v1170
  %v1172 = vrot.slane %v811, %v1171
  %v1173 = vsel %vm1067, %v1172, %v1168
  %v1174 = vlaneseq
  %v1175 = vshrl.u32 %v1174, 7
  %v1176 = vsub.s32 %v1069, %v1175
  %v1177 = vrot.slane %v812, %v1176
  %v1178 = vsel %vm1074, %v1177, %v1173
  %v1179 = vlaneseq
  %v1180 = vshrl.u32 %v1179, 7
  %v1181 = vsub.s32 %v1076, %v1180
  %v1182 = vrot.slane %v813, %v1181
  %v1183 = vsel %vm1081, %v1182, %v1178
  %v1184 = vlaneseq
  %v1185 = vshrl.u32 %v1184, 7
  %v1186 = vsub.s32 %v1083, %v1185
  %v1187 = vrot.slane %v814, %v1186
  %v1188 = vsel %vm1088, %v1187, %v1183
  %v1189 = vlaneseq
  %v1190 = vshrl.u32 %v1189, 7
  %v1191 = vsub.s32 %v1090, %v1190
  %v1192 = vrot.slane %v815, %v1191
  %v1193 = vsel %vm1095, %v1192, %v1188
  %v1194 = vlaneseq
  %v1195 = vshrl.u32 %v1194, 7
  %v1196 = vsub.s32 %v1097, %v1195
  %v1197 = vrot.slane %v816, %v1196
  %v1198 = vsel %vm1102, %v1197, %v1193
  %v1199 = vlaneseq
  %v1200 = vshrl.u32 %v1199, 7
  %v1201 = vsub.s32 %v1104, %v1200
  %v1202 = vrot.slane %v817, %v1201
  %v1203 = vsel %vm1109, %v1202, %v1198
  %v1204 = vlaneseq
  %v1205 = vshrl.u32 %v1204, 7
  %v1206 = vsub.s32 %v1111, %v1205
  %v1207 = vrot.slane %v818, %v1206
  %v1208 = vsel %vm1116, %v1207, %v1203
  %v1209 = vlaneseq
  %v1210 = vshrl.u32 %v1209, 7
  %v1211 = vsub.s32 %v1118, %v1210
  %v1212 = vrot.slane %v819, %v1211
  %v1213 = vsel %vm1123, %v1212, %v1208
  %v1214 = vlaneseq
  %v1215 = vshrl.u32 %v1214, 7
  %v1216 = vsub.s32 %v1125, %v1215
  %v1217 = vrot.slane %v820, %v1216
  %v1218 = vsel %vm1130, %v1217, %v1213
  %v1219 = vlaneseq
  %v1220 = vshrl.u32 %v1219, 7
  %v1221 = vsub.s32 %v1132, %v1220
  %v1222 = vrot.slane %v821, %v1221
  %v1223 = vsel %vm1137, %v1222, %v1218
  %v1224 = vlaneseq
  %v1225 = vshrl.u32 %v1224, 7
  %v1226 = vsub.s32 %v1139, %v1225
  %v1227 = vrot.slane %v822, %v1226
  %v1228 = vsel %vm1144, %v1227, %v1223
  %v1229 = vlaneseq
  %v1230 = vshrl.u32 %v1229, 7
  %v1231 = vsub.s32 %v1146, %v1230
  %v1232 = vrot.slane %v823, %v1231
  %v1233 = vsel %vm1151, %v1232, %v1228
  %v1234 = vlaneseq
  %v1235 = vshrl.u32 %v1234, 7
  %v1236 = vsub.s32 %v1153, %v1235
  %v1237 = vrot.slane %v824, %v1236
  %v1238 = vsel %vm1158, %v1237, %v1233
  %v1239 = vlaneseq
  %v1240 = vshrl.u32 %v1239, 7
  %v1241 = vsub.s32 %v1050, %v1240
  %v1242 = vrot.slane %v825, %v1241
  %v1243 = vlaneseq
  %v1244 = vshrl.u32 %v1243, 7
  %v1245 = vsub.s32 %v1055, %v1244
  %v1246 = vrot.slane %v826, %v1245
  %v1247 = vsel %vm1060, %v1246, %v1242
  %v1248 = vlaneseq
  %v1249 = vshrl.u32 %v1248, 7
  %v1250 = vsub.s32 %v1062, %v1249
  %v1251 = vrot.slane %v827, %v1250
  %v1252 = vsel %vm1067, %v1251, %v1247
  %v1253 = vlaneseq
  %v1254 = vshrl.u32 %v1253, 7
  %v1255 = vsub.s32 %v1069, %v1254
  %v1256 = vrot.slane %v828, %v1255
  %v1257 = vsel %vm1074, %v1256, %v1252
  %v1258 = vlaneseq
  %v1259 = vshrl.u32 %v1258, 7
  %v1260 = vsub.s32 %v1076, %v1259
  %v1261 = vrot.slane %v829, %v1260
  %v1262 = vsel %vm1081, %v1261, %v1257
  %v1263 = vlaneseq
  %v1264 = vshrl.u32 %v1263, 7
  %v1265 = vsub.s32 %v1083, %v1264
  %v1266 = vrot.slane %v830, %v1265
  %v1267 = vsel %vm1088, %v1266, %v1262
  %v1268 = vlaneseq
  %v1269 = vshrl.u32 %v1268, 7
  %v1270 = vsub.s32 %v1090, %v1269
  %v1271 = vrot.slane %v831, %v1270
  %v1272 = vsel %vm1095, %v1271, %v1267
  %v1273 = vlaneseq
  %v1274 = vshrl.u32 %v1273, 7
  %v1275 = vsub.s32 %v1097, %v1274
  %v1276 = vrot.slane %v832, %v1275
  %v1277 = vsel %vm1102, %v1276, %v1272
  %v1278 = vlaneseq
  %v1279 = vshrl.u32 %v1278, 7
  %v1280 = vsub.s32 %v1104, %v1279
  %v1281 = vrot.slane %v833, %v1280
  %v1282 = vsel %vm1109, %v1281, %v1277
  %v1283 = vlaneseq
  %v1284 = vshrl.u32 %v1283, 7
  %v1285 = vsub.s32 %v1111, %v1284
  %v1286 = vrot.slane %v834, %v1285
  %v1287 = vsel %vm1116, %v1286, %v1282
  %v1288 = vlaneseq
  %v1289 = vshrl.u32 %v1288, 7
  %v1290 = vsub.s32 %v1118, %v1289
  %v1291 = vrot.slane %v835, %v1290
  %v1292 = vsel %vm1123, %v1291, %v1287
  %v1293 = vlaneseq
  %v1294 = vshrl.u32 %v1293, 7
  %v1295 = vsub.s32 %v1125, %v1294
  %v1296 = vrot.slane %v836, %v1295
  %v1297 = vsel %vm1130, %v1296, %v1292
  %v1298 = vlaneseq
  %v1299 = vshrl.u32 %v1298, 7
  %v1300 = vsub.s32 %v1132, %v1299
  %v1301 = vrot.slane %v837, %v1300
  %v1302 = vsel %vm1137, %v1301, %v1297
  %v1303 = vlaneseq
  %v1304 = vshrl.u32 %v1303, 7
  %v1305 = vsub.s32 %v1139, %v1304
  %v1306 = vrot.slane %v838, %v1305
  %v1307 = vsel %vm1144, %v1306, %v1302
  %v1308 = vlaneseq
  %v1309 = vshrl.u32 %v1308, 7
  %v1310 = vsub.s32 %v1146, %v1309
  %v1311 = vrot.slane %v839, %v1310
  %v1312 = vsel %vm1151, %v1311, %v1307
  %v1313 = vlaneseq
  %v1314 = vshrl.u32 %v1313, 7
  %v1315 = vsub.s32 %v1153, %v1314
  %v1316 = vrot.slane %v840, %v1315
  %v1317 = vsel %vm1158, %v1316, %v1312
  %v1318 = vlaneseq
  %v1319 = vshrl.u32 %v1318, 7
  %v1320 = vsub.s32 %v1050, %v1319
  %v1321 = vrot.slane %v841, %v1320
  %v1322 = vlaneseq
  %v1323 = vshrl.u32 %v1322, 7
  %v1324 = vsub.s32 %v1055, %v1323
  %v1325 = vrot.slane %v842, %v1324
  %v1326 = vsel %vm1060, %v1325, %v1321
  %v1327 = vlaneseq
  %v1328 = vshrl.u32 %v1327, 7
  %v1329 = vsub.s32 %v1062, %v1328
  %v1330 = vrot.slane %v843, %v1329
  %v1331 = vsel %vm1067, %v1330, %v1326
  %v1332 = vlaneseq
  %v1333 = vshrl.u32 %v1332, 7
  %v1334 = vsub.s32 %v1069, %v1333
  %v1335 = vrot.slane %v844, %v1334
  %v1336 = vsel %vm1074, %v1335, %v1331
  %v1337 = vlaneseq
  %v1338 = vshrl.u32 %v1337, 7
  %v1339 = vsub.s32 %v1076, %v1338
  %v1340 = vrot.slane %v845, %v1339
  %v1341 = vsel %vm1081, %v1340, %v1336
  %v1342 = vlaneseq
  %v1343 = vshrl.u32 %v1342, 7
  %v1344 = vsub.s32 %v1083, %v1343
  %v1345 = vrot.slane %v846, %v1344
  %v1346 = vsel %vm1088, %v1345, %v1341
  %v1347 = vlaneseq
  %v1348 = vshrl.u32 %v1347, 7
  %v1349 = vsub.s32 %v1090, %v1348
  %v1350 = vrot.slane %v847, %v1349
  %v1351 = vsel %vm1095, %v1350, %v1346
  %v1352 = vlaneseq
  %v1353 = vshrl.u32 %v1352, 7
  %v1354 = vsub.s32 %v1097, %v1353
  %v1355 = vrot.slane %v848, %v1354
  %v1356 = vsel %vm1102, %v1355, %v1351
  %v1357 = vlaneseq
  %v1358 = vshrl.u32 %v1357, 7
  %v1359 = vsub.s32 %v1104, %v1358
  %v1360 = vrot.slane %v849, %v1359
  %v1361 = vsel %vm1109, %v1360, %v1356
  %v1362 = vlaneseq
  %v1363 = vshrl.u32 %v1362, 7
  %v1364 = vsub.s32 %v1111, %v1363
  %v1365 = vrot.slane %v850, %v1364
  %v1366 = vsel %vm1116, %v1365, %v1361
  %v1367 = vlaneseq
  %v1368 = vshrl.u32 %v1367, 7
  %v1369 = vsub.s32 %v1118, %v1368
  %v1370 = vrot.slane %v851, %v1369
  %v1371 = vsel %vm1123, %v1370, %v1366
  %v1372 = vlaneseq
  %v1373 = vshrl.u32 %v1372, 7
  %v1374 = vsub.s32 %v1125, %v1373
  %v1375 = vrot.slane %v852, %v1374
  %v1376 = vsel %vm1130, %v1375, %v1371
  %v1377 = vlaneseq
  %v1378 = vshrl.u32 %v1377, 7
  %v1379 = vsub.s32 %v1132, %v1378
  %v1380 = vrot.slane %v853, %v1379
  %v1381 = vsel %vm1137, %v1380, %v1376
  %v1382 = vlaneseq
  %v1383 = vshrl.u32 %v1382, 7
  %v1384 = vsub.s32 %v1139, %v1383
  %v1385 = vrot.slane %v854, %v1384
  %v1386 = vsel %vm1144, %v1385, %v1381
  %v1387 = vlaneseq
  %v1388 = vshrl.u32 %v1387, 7
  %v1389 = vsub.s32 %v1146, %v1388
  %v1390 = vrot.slane %v855, %v1389
  %v1391 = vsel %vm1151, %v1390, %v1386
  %v1392 = vlaneseq
  %v1393 = vshrl.u32 %v1392, 7
  %v1394 = vsub.s32 %v1153, %v1393
  %v1395 = vrot.slane %v856, %v1394
  %v1396 = vsel %vm1158, %v1395, %v1391
  %v1397 = vlaneseq
  %v1398 = vshrl.u32 %v1397, 7
  %v1399 = vsub.s32 %v1050, %v1398
  %v1400 = vrot.slane %v857, %v1399
  %v1401 = vlaneseq
  %v1402 = vshrl.u32 %v1401, 7
  %v1403 = vsub.s32 %v1055, %v1402
  %v1404 = vrot.slane %v858, %v1403
  %v1405 = vsel %vm1060, %v1404, %v1400
  %v1406 = vlaneseq
  %v1407 = vshrl.u32 %v1406, 7
  %v1408 = vsub.s32 %v1062, %v1407
  %v1409 = vrot.slane %v859, %v1408
  %v1410 = vsel %vm1067, %v1409, %v1405
  %v1411 = vlaneseq
  %v1412 = vshrl.u32 %v1411, 7
  %v1413 = vsub.s32 %v1069, %v1412
  %v1414 = vrot.slane %v860, %v1413
  %v1415 = vsel %vm1074, %v1414, %v1410
  %v1416 = vlaneseq
  %v1417 = vshrl.u32 %v1416, 7
  %v1418 = vsub.s32 %v1076, %v1417
  %v1419 = vrot.slane %v861, %v1418
  %v1420 = vsel %vm1081, %v1419, %v1415
  %v1421 = vlaneseq
  %v1422 = vshrl.u32 %v1421, 7
  %v1423 = vsub.s32 %v1083, %v1422
  %v1424 = vrot.slane %v862, %v1423
  %v1425 = vsel %vm1088, %v1424, %v1420
  %v1426 = vlaneseq
  %v1427 = vshrl.u32 %v1426, 7
  %v1428 = vsub.s32 %v1090, %v1427
  %v1429 = vrot.slane %v863, %v1428
  %v1430 = vsel %vm1095, %v1429, %v1425
  %v1431 = vlaneseq
  %v1432 = vshrl.u32 %v1431, 7
  %v1433 = vsub.s32 %v1097, %v1432
  %v1434 = vrot.slane %v864, %v1433
  %v1435 = vsel %vm1102, %v1434, %v1430
  %v1436 = vlaneseq
  %v1437 = vshrl.u32 %v1436, 7
  %v1438 = vsub.s32 %v1104, %v1437
  %v1439 = vrot.slane %v865, %v1438
  %v1440 = vsel %vm1109, %v1439, %v1435
  %v1441 = vlaneseq
  %v1442 = vshrl.u32 %v1441, 7
  %v1443 = vsub.s32 %v1111, %v1442
  %v1444 = vrot.slane %v866, %v1443
  %v1445 = vsel %vm1116, %v1444, %v1440
  %v1446 = vlaneseq
  %v1447 = vshrl.u32 %v1446, 7
  %v1448 = vsub.s32 %v1118, %v1447
  %v1449 = vrot.slane %v867, %v1448
  %v1450 = vsel %vm1123, %v1449, %v1445
  %v1451 = vlaneseq
  %v1452 = vshrl.u32 %v1451, 7
  %v1453 = vsub.s32 %v1125, %v1452
  %v1454 = vrot.slane %v868, %v1453
  %v1455 = vsel %vm1130, %v1454, %v1450
  %v1456 = vlaneseq
  %v1457 = vshrl.u32 %v1456, 7
  %v1458 = vsub.s32 %v1132, %v1457
  %v1459 = vrot.slane %v869, %v1458
  %v1460 = vsel %vm1137, %v1459, %v1455
  %v1461 = vlaneseq
  %v1462 = vshrl.u32 %v1461, 7
  %v1463 = vsub.s32 %v1139, %v1462
  %v1464 = vrot.slane %v870, %v1463
  %v1465 = vsel %vm1144, %v1464, %v1460
  %v1466 = vlaneseq
  %v1467 = vshrl.u32 %v1466, 7
  %v1468 = vsub.s32 %v1146, %v1467
  %v1469 = vrot.slane %v871, %v1468
  %v1470 = vsel %vm1151, %v1469, %v1465
  %v1471 = vlaneseq
  %v1472 = vshrl.u32 %v1471, 7
  %v1473 = vsub.s32 %v1153, %v1472
  %v1474 = vrot.slane %v872, %v1473
  %v1475 = vsel %vm1158, %v1474, %v1470
  %v1476 = vlaneseq
  %v1477 = vshrl.u32 %v1476, 7
  %v1478 = vsub.s32 %v1050, %v1477
  %v1479 = vrot.slane %v873, %v1478
  %v1480 = vlaneseq
  %v1481 = vshrl.u32 %v1480, 7
  %v1482 = vsub.s32 %v1055, %v1481
  %v1483 = vrot.slane %v874, %v1482
  %v1484 = vsel %vm1060, %v1483, %v1479
  %v1485 = vlaneseq
  %v1486 = vshrl.u32 %v1485, 7
  %v1487 = vsub.s32 %v1062, %v1486
  %v1488 = vrot.slane %v875, %v1487
  %v1489 = vsel %vm1067, %v1488, %v1484
  %v1490 = vlaneseq
  %v1491 = vshrl.u32 %v1490, 7
  %v1492 = vsub.s32 %v1069, %v1491
  %v1493 = vrot.slane %v876, %v1492
  %v1494 = vsel %vm1074, %v1493, %v1489
  %v1495 = vlaneseq
  %v1496 = vshrl.u32 %v1495, 7
  %v1497 = vsub.s32 %v1076, %v1496
  %v1498 = vrot.slane %v877, %v1497
  %v1499 = vsel %vm1081, %v1498, %v1494
  %v1500 = vlaneseq
  %v1501 = vshrl.u32 %v1500, 7
  %v1502 = vsub.s32 %v1083, %v1501
  %v1503 = vrot.slane %v878, %v1502
  %v1504 = vsel %vm1088, %v1503, %v1499
  %v1505 = vlaneseq
  %v1506 = vshrl.u32 %v1505, 7
  %v1507 = vsub.s32 %v1090, %v1506
  %v1508 = vrot.slane %v879, %v1507
  %v1509 = vsel %vm1095, %v1508, %v1504
  %v1510 = vlaneseq
  %v1511 = vshrl.u32 %v1510, 7
  %v1512 = vsub.s32 %v1097, %v1511
  %v1513 = vrot.slane %v880, %v1512
  %v1514 = vsel %vm1102, %v1513, %v1509
  %v1515 = vlaneseq
  %v1516 = vshrl.u32 %v1515, 7
  %v1517 = vsub.s32 %v1104, %v1516
  %v1518 = vrot.slane %v881, %v1517
  %v1519 = vsel %vm1109, %v1518, %v1514
  %v1520 = vlaneseq
  %v1521 = vshrl.u32 %v1520, 7
  %v1522 = vsub.s32 %v1111, %v1521
  %v1523 = vrot.slane %v882, %v1522
  %v1524 = vsel %vm1116, %v1523, %v1519
  %v1525 = vlaneseq
  %v1526 = vshrl.u32 %v1525, 7
  %v1527 = vsub.s32 %v1118, %v1526
  %v1528 = vrot.slane %v883, %v1527
  %v1529 = vsel %vm1123, %v1528, %v1524
  %v1530 = vlaneseq
  %v1531 = vshrl.u32 %v1530, 7
  %v1532 = vsub.s32 %v1125, %v1531
  %v1533 = vrot.slane %v884, %v1532
  %v1534 = vsel %vm1130, %v1533, %v1529
  %v1535 = vlaneseq
  %v1536 = vshrl.u32 %v1535, 7
  %v1537 = vsub.s32 %v1132, %v1536
  %v1538 = vrot.slane %v885, %v1537
  %v1539 = vsel %vm1137, %v1538, %v1534
  %v1540 = vlaneseq
  %v1541 = vshrl.u32 %v1540, 7
  %v1542 = vsub.s32 %v1139, %v1541
  %v1543 = vrot.slane %v886, %v1542
  %v1544 = vsel %vm1144, %v1543, %v1539
  %v1545 = vlaneseq
  %v1546 = vshrl.u32 %v1545, 7
  %v1547 = vsub.s32 %v1146, %v1546
  %v1548 = vrot.slane %v887, %v1547
  %v1549 = vsel %vm1151, %v1548, %v1544
  %v1550 = vlaneseq
  %v1551 = vshrl.u32 %v1550, 7
  %v1552 = vsub.s32 %v1153, %v1551
  %v1553 = vrot.slane %v888, %v1552
  %v1554 = vsel %vm1158, %v1553, %v1549
  %v1555 = vlaneseq
  %v1556 = vshrl.u32 %v1555, 7
  %v1557 = vsub.s32 %v1050, %v1556
  %v1558 = vrot.slane %v889, %v1557
  %v1559 = vlaneseq
  %v1560 = vshrl.u32 %v1559, 7
  %v1561 = vsub.s32 %v1055, %v1560
  %v1562 = vrot.slane %v890, %v1561
  %v1563 = vsel %vm1060, %v1562, %v1558
  %v1564 = vlaneseq
  %v1565 = vshrl.u32 %v1564, 7
  %v1566 = vsub.s32 %v1062, %v1565
  %v1567 = vrot.slane %v891, %v1566
  %v1568 = vsel %vm1067, %v1567, %v1563
  %v1569 = vlaneseq
  %v1570 = vshrl.u32 %v1569, 7
  %v1571 = vsub.s32 %v1069, %v1570
  %v1572 = vrot.slane %v892, %v1571
  %v1573 = vsel %vm1074, %v1572, %v1568
  %v1574 = vlaneseq
  %v1575 = vshrl.u32 %v1574, 7
  %v1576 = vsub.s32 %v1076, %v1575
  %v1577 = vrot.slane %v893, %v1576
  %v1578 = vsel %vm1081, %v1577, %v1573
  %v1579 = vlaneseq
  %v1580 = vshrl.u32 %v1579, 7
  %v1581 = vsub.s32 %v1083, %v1580
  %v1582 = vrot.slane %v894, %v1581
  %v1583 = vsel %vm1088, %v1582, %v1578
  %v1584 = vlaneseq
  %v1585 = vshrl.u32 %v1584, 7
  %v1586 = vsub.s32 %v1090, %v1585
  %v1587 = vrot.slane %v895, %v1586
  %v1588 = vsel %vm1095, %v1587, %v1583
  %v1589 = vlaneseq
  %v1590 = vshrl.u32 %v1589, 7
  %v1591 = vsub.s32 %v1097, %v1590
  %v1592 = vrot.slane %v896, %v1591
  %v1593 = vsel %vm1102, %v1592, %v1588
  %v1594 = vlaneseq
  %v1595 = vshrl.u32 %v1594, 7
  %v1596 = vsub.s32 %v1104, %v1595
  %v1597 = vrot.slane %v897, %v1596
  %v1598 = vsel %vm1109, %v1597, %v1593
  %v1599 = vlaneseq
  %v1600 = vshrl.u32 %v1599, 7
  %v1601 = vsub.s32 %v1111, %v1600
  %v1602 = vrot.slane %v898, %v1601
  %v1603 = vsel %vm1116, %v1602, %v1598
  %v1604 = vlaneseq
  %v1605 = vshrl.u32 %v1604, 7
  %v1606 = vsub.s32 %v1118, %v1605
  %v1607 = vrot.slane %v899, %v1606
  %v1608 = vsel %vm1123, %v1607, %v1603
  %v1609 = vlaneseq
  %v1610 = vshrl.u32 %v1609, 7
  %v1611 = vsub.s32 %v1125, %v1610
  %v1612 = vrot.slane %v900, %v1611
  %v1613 = vsel %vm1130, %v1612, %v1608
  %v1614 = vlaneseq
  %v1615 = vshrl.u32 %v1614, 7
  %v1616 = vsub.s32 %v1132, %v1615
  %v1617 = vrot.slane %v901, %v1616
  %v1618 = vsel %vm1137, %v1617, %v1613
  %v1619 = vlaneseq
  %v1620 = vshrl.u32 %v1619, 7
  %v1621 = vsub.s32 %v1139, %v1620
  %v1622 = vrot.slane %v902, %v1621
  %v1623 = vsel %vm1144, %v1622, %v1618
  %v1624 = vlaneseq
  %v1625 = vshrl.u32 %v1624, 7
  %v1626 = vsub.s32 %v1146, %v1625
  %v1627 = vrot.slane %v903, %v1626
  %v1628 = vsel %vm1151, %v1627, %v1623
  %v1629 = vlaneseq
  %v1630 = vshrl.u32 %v1629, 7
  %v1631 = vsub.s32 %v1153, %v1630
  %v1632 = vrot.slane %v904, %v1631
  %v1633 = vsel %vm1158, %v1632, %v1628
  %v1634 = vlaneseq
  %v1635 = vshrl.u32 %v1634, 7
  %v1636 = vsub.s32 %v1050, %v1635
  %v1637 = vrot.slane %v905, %v1636
  %v1638 = vlaneseq
  %v1639 = vshrl.u32 %v1638, 7
  %v1640 = vsub.s32 %v1055, %v1639
  %v1641 = vrot.slane %v906, %v1640
  %v1642 = vsel %vm1060, %v1641, %v1637
  %v1643 = vlaneseq
  %v1644 = vshrl.u32 %v1643, 7
  %v1645 = vsub.s32 %v1062, %v1644
  %v1646 = vrot.slane %v907, %v1645
  %v1647 = vsel %vm1067, %v1646, %v1642
  %v1648 = vlaneseq
  %v1649 = vshrl.u32 %v1648, 7
  %v1650 = vsub.s32 %v1069, %v1649
  %v1651 = vrot.slane %v908, %v1650
  %v1652 = vsel %vm1074, %v1651, %v1647
  %v1653 = vlaneseq
  %v1654 = vshrl.u32 %v1653, 7
  %v1655 = vsub.s32 %v1076, %v1654
  %v1656 = vrot.slane %v909, %v1655
  %v1657 = vsel %vm1081, %v1656, %v1652
  %v1658 = vlaneseq
  %v1659 = vshrl.u32 %v1658, 7
  %v1660 = vsub.s32 %v1083, %v1659
  %v1661 = vrot.slane %v910, %v1660
  %v1662 = vsel %vm1088, %v1661, %v1657
  %v1663 = vlaneseq
  %v1664 = vshrl.u32 %v1663, 7
  %v1665 = vsub.s32 %v1090, %v1664
  %v1666 = vrot.slane %v911, %v1665
  %v1667 = vsel %vm1095, %v1666, %v1662
  %v1668 = vlaneseq
  %v1669 = vshrl.u32 %v1668, 7
  %v1670 = vsub.s32 %v1097, %v1669
  %v1671 = vrot.slane %v912, %v1670
  %v1672 = vsel %vm1102, %v1671, %v1667
  %v1673 = vlaneseq
  %v1674 = vshrl.u32 %v1673, 7
  %v1675 = vsub.s32 %v1104, %v1674
  %v1676 = vrot.slane %v913, %v1675
  %v1677 = vsel %vm1109, %v1676, %v1672
  %v1678 = vlaneseq
  %v1679 = vshrl.u32 %v1678, 7
  %v1680 = vsub.s32 %v1111, %v1679
  %v1681 = vrot.slane %v914, %v1680
  %v1682 = vsel %vm1116, %v1681, %v1677
  %v1683 = vlaneseq
  %v1684 = vshrl.u32 %v1683, 7
  %v1685 = vsub.s32 %v1118, %v1684
  %v1686 = vrot.slane %v915, %v1685
  %v1687 = vsel %vm1123, %v1686, %v1682
  %v1688 = vlaneseq
  %v1689 = vshrl.u32 %v1688, 7
  %v1690 = vsub.s32 %v1125, %v1689
  %v1691 = vrot.slane %v916, %v1690
  %v1692 = vsel %vm1130, %v1691, %v1687
  %v1693 = vlaneseq
  %v1694 = vshrl.u32 %v1693, 7
  %v1695 = vsub.s32 %v1132, %v1694
  %v1696 = vrot.slane %v917, %v1695
  %v1697 = vsel %vm1137, %v1696, %v1692
  %v1698 = vlaneseq
  %v1699 = vshrl.u32 %v1698, 7
  %v1700 = vsub.s32 %v1139, %v1699
  %v1701 = vrot.slane %v918, %v1700
  %v1702 = vsel %vm1144, %v1701, %v1697
  %v1703 = vlaneseq
  %v1704 = vshrl.u32 %v1703, 7
  %v1705 = vsub.s32 %v1146, %v1704
  %v1706 = vrot.slane %v919, %v1705
  %v1707 = vsel %vm1151, %v1706, %v1702
  %v1708 = vlaneseq
  %v1709 = vshrl.u32 %v1708, 7
  %v1710 = vsub.s32 %v1153, %v1709
  %v1711 = vrot.slane %v920, %v1710
  %v1712 = vsel %vm1158, %v1711, %v1707
  %vm1713 = vcmask 1041409
  %v1714 = vsel %vm1713, %v1238, %v1159
  %vm1715 = vcmask 1042434
  %v1716 = vsel %vm1715, %v1317, %v1714
  %vm1717 = vcmask 1043459
  %v1718 = vsel %vm1717, %v1396, %v1716
  %vm1719 = vcmask 1044484
  %v1720 = vsel %vm1719, %v1475, %v1718
  %vm1721 = vcmask 1045509
  %v1722 = vsel %vm1721, %v1554, %v1720
  %vm1723 = vcmask 1046534
  %v1724 = vsel %vm1723, %v1633, %v1722
  %vm1725 = vcmask 1047559
  %v1726 = vsel %vm1725, %v1712, %v1724
  %1728 = vst [vmem:[%s3] sm:$0xff] %v1726
  // Predicated region
  $region14: #{frequency_filter.1} parent=0 // pred_check
    _
  $region15: #{frequency_filter.1} parent=0 // pred_check_branch
    %1730 = sbr.rel (0) target = $region17
  $region16: #{frequency_filter.1} parent=0 // pred_region
    _
  $region17: #{frequency_filter.1} parent=0 // pred_fallthru
    _
  // Predicated region
  $region18: #{frequency_filter.1} parent=0 // pred_check
    _
  $region19: #{frequency_filter.1} parent=0 // pred_check_branch
    %1732 = sbr.rel (0) target = $region21
  $region20: #{frequency_filter.1} parent=0 // pred_region
    _
  $region21: #{frequency_filter.1} parent=0 // pred_fallthru
    _

</llo_original>
